<compile_context>
chip_gen: v7x
topology: tpu7x:2x2x1
jax: 0.10.0
libtpu: 0.0.40
codegen_flags: <defaults>
</compile_context>

<pallas_src>
import functools

import jax
import jax.numpy as jnp
from jax import lax
from jax.experimental import pallas as pl
from jax.experimental.pallas import tpu as pltpu

# MXU operand dtype for the recurrent matmuls (f32 accumulation via
# preferred_element_type). f32 x f32 on the MXU is emulated with multiple bf16
# passes; bf16 operands cut per-step matmul latency on every generation.
MXU_DTYPE = jnp.bfloat16


# ---------------------------------------------------------------------------
# Pallas kernel: full 2-layer LSTM recurrence (skewed/fused) + final linear head
# ---------------------------------------------------------------------------
def _lstm_kernel(
    x2d_ref,    # (S*B, Din) f32        raw input, time-major rows [t*B:(t+1)*B]
    w0_ref,     # (Din, 8H)  f32        input->gate weights, kernel gate layout (layer-1 cols 0)
    bb_ref,     # (1, 8H)    f32        both layers' biases, kernel gate layout
    wbig_ref,   # (2H, 8H)   MXU_DTYPE  fused recurrent weights: [h0|h1] -> both layers' gates
    w1_ref,     # (2H, 4H)   MXU_DTYPE  [W_ih1; W_hh1], PyTorch [i f g o] order (epilogue only)
    b1_ref,     # (1, 4H)    f32        b_ih1 + b_hh1 (epilogue only)
    wlin_ref,   # (O, H)     f32        final linear weight, pre-transposed
    blin_ref,   # (1, O)     f32
    y_ref,      # (B, O)     f32
):
    f32 = jnp.float32
    B = y_ref.shape[0]
    S = x2d_ref.shape[0] // B
    O = y_ref.shape[1]
    H = wlin_ref.shape[1]
    H2, H4, H8 = 2 * H, 4 * H, 8 * H
    cd = wbig_ref.dtype  # MXU operand dtype

    # ---- Preamble: layer-0 input projection for every timestep, hoisted out of the
    # recurrence and computed here inside the kernel (removes the separate XLA op and
    # the HBM round trip of the projected buffer).
    x2d = x2d_ref[...]
    w0 = w0_ref[...]
    if x2d.shape[1] == 1:
        # input_dim == 1: the projection is a rank-1 broadcast multiply; skip the MXU.
        addend = x2d * w0 + bb_ref[...]
    else:
        addend = jnp.dot(x2d, w0, preferred_element_type=f32) + bb_ref[...]
    # addend: (S*B, 8H) in kernel gate layout [i0 i1 f0 f1 o0 o1 g0 g1];
    # layer-0 columns hold x_t @ W_ih0 + b0, layer-1 columns hold b1.

    wbig = wbig_ref[...]  # hoisted once; stays VMEM/vreg resident across the loop

    # Mask that zeroes the layer-1 lane half of a (B, 2H) state (hoisted).
    keep0 = (lax.broadcasted_iota(jnp.int32, (1, H2), 1) < H).astype(f32)

    # ---- Recurrence, skewed by one step: iteration t computes layer-0 step t and
    # layer-1 step t-1.  Carries (lane halves = [layer0 | layer1]):
    #   xh   = [h0(t-1) | h1(t-2)]   (B, 2H)
    #   ccat = [c0(t-1) | c1(t-2)]   (B, 2H)
    xh = jnp.zeros((B, H2), f32)
    ccat = jnp.zeros((B, H2), f32)

    # S is small -> fully unrolled (static Python loop == fori_loop(unroll=True)).
    # TODO(synk): for long sequences switch to a fori_loop with moderate unroll and
    # stream `addend` in timestep chunks (pl.Buffered) instead of full residency.
    for t in range(S):
        a_t = addend[t * B:(t + 1) * B, :]                              # (B, 8H)
        if t == 0:
            gates = a_t          # zero initial state -> recurrent matmul contributes 0
        else:
            gates = a_t + jnp.dot(xh.astype(cd), wbig, preferred_element_type=f32)
        # Wide nonlinearities over the fused gate layout:
        sig = jax.nn.sigmoid(gates[:, 0:H4])                            # [i0 i1 f0 f1] (full vreg)
        o_cat = jax.nn.sigmoid(gates[:, H4:H4 + H2])                    # [o0 o1]
        g_cat = jnp.tanh(gates[:, H4 + H2:H8])                          # [g0 g1]
        i_cat = sig[:, 0:H2]
        f_cat = sig[:, H2:H4]
        ccat = f_cat * ccat + i_cat * g_cat
        xh = o_cat * jnp.tanh(ccat)                                     # = [h0_new | h1_new]
        if t == 0:
            # Enforce zero initial state for layer 1: discard the spurious "step -1"
            # layer-1 update produced by the skewed first iteration.
            xh = xh * keep0
            ccat = ccat * keep0

    # ---- Epilogue: layer-1 update for the last timestep (left pending by the skew).
    gates1 = (jnp.dot(xh.astype(cd), w1_ref[...], preferred_element_type=f32)
              + b1_ref[...])                                            # (B, 4H), [i f g o]
    sig1 = jax.nn.sigmoid(gates1)                                       # one full-vreg sigmoid
    i1 = sig1[:, 0:H]
    f1 = sig1[:, H:H2]
    o1 = sig1[:, 3 * H:H4]
    g1 = jnp.tanh(gates1[:, H2:3 * H])
    c1 = f1 * ccat[:, H:H2] + i1 * g1
    h1 = o1 * jnp.tanh(c1)                                              # (B, H) = top-layer h_T

    # ---- Final linear head.  With a single output column, do a VPU multiply + lane
    # reduction instead of spinning up an MXU pass for N=1.
    if O == 1:
        y = jnp.sum(h1 * wlin_ref[...], axis=-1, keepdims=True)
    else:
        y = lax.dot_general(h1, wlin_ref[...], (((1,), (1,)), ((), ())),
                            preferred_element_type=f32)
    y_ref[...] = y + blin_ref[...]


# ---------------------------------------------------------------------------
# Wrapper: one-time weight re-layouts + pallas_call
# ---------------------------------------------------------------------------
def _regroup_gates(wl0, wl1, H):
    """Reorder two PyTorch-gate-order [i f g o] column blocks (R, 4H) each into the
    kernel's fused layout [i0 i1 f0 f1 o0 o1 g0 g1] of shape (R, 8H)."""
    g = lambda w, k: w[:, k * H:(k + 1) * H]
    return jnp.concatenate(
        [g(wl0, 0), g(wl1, 0),     # i0 i1
         g(wl0, 1), g(wl1, 1),     # f0 f1
         g(wl0, 3), g(wl1, 3),     # o0 o1
         g(wl0, 2), g(wl1, 2)],    # g0 g1
        axis=1)


def lstm_forward(x, params):
    """2-layer LSTM + Linear head.

    x: (seq_len, batch, input_dim) float32 (time-major, PyTorch batch_first=False)
    returns: y_pred (batch, output_dim) float32
    """
    S, B, Din = x.shape
    H = params["whh0"].shape[0]
    O = params["wlin"].shape[1]

    # One-time weight re-layouts (outside the hot path).
    zeros_h = jnp.zeros((H, 4 * H), jnp.float32)
    w_big = jnp.concatenate(
        [_regroup_gates(params["whh0"], params["wih1"], H),   # rows driven by h0
         _regroup_gates(zeros_h, params["whh1"], H)],         # rows driven by h1
        axis=0).astype(MXU_DTYPE)                             # (2H, 8H)
    w0_big = _regroup_gates(params["wih0"],
                            jnp.zeros((Din, 4 * H), jnp.float32), H)   # (Din, 8H)
    b_big = _regroup_gates(params["b0"], params["b1"], H)              # (1, 8H)
    w1 = jnp.concatenate([params["wih1"], params["whh1"]],
                         axis=0).astype(MXU_DTYPE)                     # (2H, 4H)
    wlin_t = params["wlin"].T                                          # (O, H)
    x2d = x.reshape(S * B, Din).astype(jnp.float32)                    # free metadata reshape

    full = lambda shape: pl.BlockSpec(shape, lambda i: tuple(0 for _ in shape))

    # TODO(synk): if batch grows, add a leading "parallel" grid axis over batch tiles
    # so v7x's second TensorCore is used; at B=2 a single program is correct and fastest.
    y = pl.pallas_call(
        _lstm_kernel,
        out_shape=jax.ShapeDtypeStruct((B, O), jnp.float32),
        grid_spec=pltpu.PrefetchScalarGridSpec(
            num_scalar_prefetch=0,
            grid=(1,),
            in_specs=[
                full((S * B, Din)),
                full((Din, 8 * H)),
                full((1, 8 * H)),
                full((2 * H, 8 * H)),
                full((2 * H, 4 * H)),
                full((1, 4 * H)),
                full((O, H)),
                full((1, O)),
            ],
            out_specs=pl.BlockSpec((B, O), lambda i: (0, 0)),
        ),
        compiler_params=pltpu.CompilerParams(
            dimension_semantics=("arbitrary",),
        ),
    )(x2d, w0_big, b_big, w_big, w1, params["b1"], wlin_t, params["blin"])
    return y


# ---------------------------------------------------------------------------
# Pure-JAX reference (same math) for correctness checks.
#   mxu_dtype=bf16  -> mimics the kernel's bf16 MXU operands (tight-tolerance check)
#   mxu_dtype=f32   -> full-precision reference (loose sanity check)
# ---------------------------------------------------------------------------
def lstm_reference(x, params, mxu_dtype=jnp.float32):
    S, B, _ = x.shape
    H = params["whh0"].shape[0]
    hp = functools.partial(jnp.dot, precision=lax.Precision.HIGHEST,
                           preferred_element_type=jnp.float32)

    def mxu_dot(a, w):
        return jnp.dot(a.astype(mxu_dtype), w.astype(mxu_dtype),
                       precision=lax.Precision.HIGHEST,
                       preferred_element_type=jnp.float32)

    def gates_to_hc(gates, c):
        i = jax.nn.sigmoid(gates[:, 0 * H:1 * H])
        f = jax.nn.sigmoid(gates[:, 1 * H:2 * H])
        g = jnp.tanh(gates[:, 2 * H:3 * H])
        o = jax.nn.sigmoid(gates[:, 3 * H:4 * H])
        c_new = f * c + i * g
        return o * jnp.tanh(c_new), c_new

    def step(carry, x_t):
        h0, c0, h1, c1 = carry
        g0 = hp(x_t, params["wih0"]) + params["b0"] + mxu_dot(h0, params["whh0"])
        h0, c0 = gates_to_hc(g0, c0)
        g1 = mxu_dot(h0, params["wih1"]) + mxu_dot(h1, params["whh1"]) + params["b1"]
        h1, c1 = gates_to_hc(g1, c1)
        return (h0, c0, h1, c1), None

    init = tuple(jnp.zeros((B, H), jnp.float32) for _ in range(4))
    (_, _, h1, _), _ = lax.scan(step, init, x)
    return hp(h1, params["wlin"]) + params["blin"]


# ---------------------------------------------------------------------------
# Deterministic parameter construction (PyTorch-style uniform(-1/sqrt(H), 1/sqrt(H)))
# ---------------------------------------------------------------------------
def make_params(key, input_dim, hidden_dim, output_dim):
    H = hidden_dim
    k = 1.0 / jnp.sqrt(jnp.asarray(H, jnp.float32))
    keys = jax.random.split(key, 10)
    u = lambda kk, shape: jax.random.uniform(kk, shape, jnp.float32, -k, k)

    return {
        # layer 0 (input size input_dim), weights stored as (in_features, 4H), gate order [i f g o]
        "wih0": u(keys[0], (input_dim, 4 * H)),
        "whh0": u(keys[1], (H, 4 * H)),
        "b0":   u(keys[2], (1, 4 * H)) + u(keys[3], (1, 4 * H)),   # b_ih + b_hh
        # layer 1 (input size H)
        "wih1": u(keys[4], (H, 4 * H)),
        "whh1": u(keys[5], (H, 4 * H)),
        "b1":   u(keys[6], (1, 4 * H)) + u(keys[7], (1, 4 * H)),
        # final linear
        "wlin": u(keys[8], (H, output_dim)),
        "blin": u(keys[9], (1, output_dim)),
    }


if __name__ == "__main__":
    seq_len = 8
    batch = 2
    input_dim = 1
    hidden_dim = 32
    output_dim = 1

    key = jax.random.PRNGKey(0)
    k_x, k_p = jax.random.split(key)
    x = jax.random.normal(k_x, (seq_len, batch, input_dim), jnp.float32)
    params = make_params(k_p, input_dim, hidden_dim, output_dim)

    y_pred = jax.block_until_ready(lstm_forward(x, params))
    assert y_pred.shape == (batch, output_dim)

    # Tight check: reference with the SAME bf16 MXU operand rounding -> validates the
    # skewed/fused restructuring and weight re-layout exactly.
    y_ref_matched = jax.block_until_ready(lstm_reference(x, params, MXU_DTYPE))
    assert jnp.allclose(y_pred, y_ref_matched, atol=5e-4, rtol=5e-4), (y_pred, y_ref_matched)

    # Loose sanity check against the full-f32 reference (bf16 MXU operands carry
    # ~3 decimal digits, so tolerance is relaxed per review guidance).
    y_ref_f32 = jax.block_until_ready(lstm_reference(x, params, jnp.float32))
    assert jnp.allclose(y_pred, y_ref_f32, atol=5e-2, rtol=5e-2), (y_pred, y_ref_f32)

    print("KERNEL_OK")
</pallas_src>

<mosaic_0001>
module attributes {stable_mosaic.version = 11 : i64} {
  func.func @_lstm_kernel(%arg0: i32, %arg1: memref<16x1xf32, #tpu.memory_space<vmem>>, %arg2: memref<1x256xf32, #tpu.memory_space<vmem>>, %arg3: memref<1x256xf32, #tpu.memory_space<vmem>>, %arg4: memref<64x256xbf16, #tpu.memory_space<vmem>>, %arg5: memref<64x128xbf16, #tpu.memory_space<vmem>>, %arg6: memref<1x128xf32, #tpu.memory_space<vmem>>, %arg7: memref<1x32xf32, #tpu.memory_space<vmem>>, %arg8: memref<1x1xf32, #tpu.memory_space<vmem>>, %arg9: memref<2x1xf32, #tpu.memory_space<vmem>>) attributes {dimension_semantics = [#tpu.dimension_semantics<arbitrary>], iteration_bounds = array<i64: 1>, scalar_prefetch = 0 : i64, scratch_operands = 0 : i64, tpu.core_type = #tpu.core_type<tc>, window_params = [{pipeline_mode = #tpu.pipeline_mode<synchronous>, transform_indices = @transform_0, window_bounds = array<i64: 16, 1>}, {pipeline_mode = #tpu.pipeline_mode<synchronous>, transform_indices = @transform_1, window_bounds = array<i64: 1, 256>}, {pipeline_mode = #tpu.pipeline_mode<synchronous>, transform_indices = @transform_2, window_bounds = array<i64: 1, 256>}, {pipeline_mode = #tpu.pipeline_mode<synchronous>, transform_indices = @transform_3, window_bounds = array<i64: 64, 256>}, {pipeline_mode = #tpu.pipeline_mode<synchronous>, transform_indices = @transform_4, window_bounds = array<i64: 64, 128>}, {pipeline_mode = #tpu.pipeline_mode<synchronous>, transform_indices = @transform_5, window_bounds = array<i64: 1, 128>}, {pipeline_mode = #tpu.pipeline_mode<synchronous>, transform_indices = @transform_6, window_bounds = array<i64: 1, 32>}, {pipeline_mode = #tpu.pipeline_mode<synchronous>, transform_indices = @transform_7, window_bounds = array<i64: 1, 1>}, {pipeline_mode = #tpu.pipeline_mode<synchronous>, transform_indices = @transform_8, window_bounds = array<i64: 2, 1>}]} {
    %c0 = arith.constant 0 : index
    %c0_0 = arith.constant 0 : index
    %0 = vector.load %arg1[%c0, %c0_0] : memref<16x1xf32, #tpu.memory_space<vmem>>, vector<16x1xf32>
    %c0_1 = arith.constant 0 : index
    %c0_2 = arith.constant 0 : index
    %1 = vector.load %arg2[%c0_1, %c0_2] : memref<1x256xf32, #tpu.memory_space<vmem>>, vector<1x256xf32>
    %2 = vector.broadcast %0 : vector<16x1xf32> to vector<16x256xf32>
    %3 = vector.broadcast %1 : vector<1x256xf32> to vector<16x256xf32>
    %4 = arith.mulf %2, %3 : vector<16x256xf32>
    %c0_3 = arith.constant 0 : index
    %c0_4 = arith.constant 0 : index
    %5 = vector.load %arg3[%c0_3, %c0_4] : memref<1x256xf32, #tpu.memory_space<vmem>>, vector<1x256xf32>
    %6 = vector.broadcast %5 : vector<1x256xf32> to vector<16x256xf32>
    %7 = arith.addf %4, %6 : vector<16x256xf32>
    %c0_5 = arith.constant 0 : index
    %c0_6 = arith.constant 0 : index
    %8 = vector.load %arg4[%c0_5, %c0_6] : memref<64x256xbf16, #tpu.memory_space<vmem>>, vector<64x256xbf16>
    %9 = tpu.iota {dimensions = array<i32: 1>} : vector<1x64xi32>
    %c32_i32 = arith.constant 32 : i32
    %10 = vector.broadcast %c32_i32 : i32 to vector<1x64xi32>
    %11 = arith.cmpi slt, %9, %10 : vector<1x64xi32>
    %12 = arith.extui %11 : vector<1x64xi1> to vector<1x64xi32>
    %13 = arith.sitofp %12 : vector<1x64xi32> to vector<1x64xf32>
    %cst = arith.constant 0.000000e+00 : f32
    %14 = vector.broadcast %cst : f32 to vector<2x64xf32>
    %15 = vector.extract_strided_slice %7 {offsets = [0, 0], sizes = [2, 256], strides = [1, 1]} : vector<16x256xf32> to vector<2x256xf32>
    %16 = vector.extract_strided_slice %15 {offsets = [0, 0], sizes = [2, 128], strides = [1, 1]} : vector<2x256xf32> to vector<2x128xf32>
    %17 = arith.negf %16 : vector<2x128xf32>
    %18 = math.exp %17 : vector<2x128xf32>
    %cst_7 = arith.constant 1.000000e+00 : f32
    %19 = vector.broadcast %cst_7 : f32 to vector<2x128xf32>
    %20 = arith.addf %19, %18 : vector<2x128xf32>
    %21 = arith.divf %19, %20 : vector<2x128xf32>
    %22 = vector.extract_strided_slice %15 {offsets = [0, 128], sizes = [2, 64], strides = [1, 1]} : vector<2x256xf32> to vector<2x64xf32>
    %23 = arith.negf %22 : vector<2x64xf32>
    %24 = math.exp %23 : vector<2x64xf32>
    %cst_8 = arith.constant 1.000000e+00 : f32
    %25 = vector.broadcast %cst_8 : f32 to vector<2x64xf32>
    %26 = arith.addf %25, %24 : vector<2x64xf32>
    %27 = arith.divf %25, %26 : vector<2x64xf32>
    %28 = vector.extract_strided_slice %15 {offsets = [0, 192], sizes = [2, 64], strides = [1, 1]} : vector<2x256xf32> to vector<2x64xf32>
    %29 = math.tanh %28 : vector<2x64xf32>
    %30 = vector.extract_strided_slice %21 {offsets = [0, 0], sizes = [2, 64], strides = [1, 1]} : vector<2x128xf32> to vector<2x64xf32>
    %31 = vector.extract_strided_slice %21 {offsets = [0, 64], sizes = [2, 64], strides = [1, 1]} : vector<2x128xf32> to vector<2x64xf32>
    %32 = arith.mulf %31, %14 : vector<2x64xf32>
    %33 = arith.mulf %30, %29 : vector<2x64xf32>
    %34 = arith.addf %32, %33 : vector<2x64xf32>
    %35 = math.tanh %34 : vector<2x64xf32>
    %36 = arith.mulf %27, %35 : vector<2x64xf32>
    %37 = vector.broadcast %13 : vector<1x64xf32> to vector<2x64xf32>
    %38 = arith.mulf %36, %37 : vector<2x64xf32>
    %39 = vector.broadcast %13 : vector<1x64xf32> to vector<2x64xf32>
    %40 = arith.mulf %34, %39 : vector<2x64xf32>
    %41 = vector.extract_strided_slice %7 {offsets = [2, 0], sizes = [2, 256], strides = [1, 1]} : vector<16x256xf32> to vector<2x256xf32>
    %42 = arith.truncf %38 : vector<2x64xf32> to vector<2x64xbf16>
    %cst_9 = arith.constant dense<0.000000e+00> : vector<2x256xf32>
    %43 = tpu.matmul %42, %8, %cst_9 {dimension_numbers = #tpu.dot_dimension_numbers<[1], [0], [0], [1], [0, 0, 1, 1], [], []>} : vector<2x64xbf16>, vector<64x256xbf16>, vector<2x256xf32> -> vector<2x256xf32>
    %44 = arith.addf %41, %43 : vector<2x256xf32>
    %45 = vector.extract_strided_slice %44 {offsets = [0, 0], sizes = [2, 128], strides = [1, 1]} : vector<2x256xf32> to vector<2x128xf32>
    %46 = arith.negf %45 : vector<2x128xf32>
    %47 = math.exp %46 : vector<2x128xf32>
    %cst_10 = arith.constant 1.000000e+00 : f32
    %48 = vector.broadcast %cst_10 : f32 to vector<2x128xf32>
    %49 = arith.addf %48, %47 : vector<2x128xf32>
    %50 = arith.divf %48, %49 : vector<2x128xf32>
    %51 = vector.extract_strided_slice %44 {offsets = [0, 128], sizes = [2, 64], strides = [1, 1]} : vector<2x256xf32> to vector<2x64xf32>
    %52 = arith.negf %51 : vector<2x64xf32>
    %53 = math.exp %52 : vector<2x64xf32>
    %cst_11 = arith.constant 1.000000e+00 : f32
    %54 = vector.broadcast %cst_11 : f32 to vector<2x64xf32>
    %55 = arith.addf %54, %53 : vector<2x64xf32>
    %56 = arith.divf %54, %55 : vector<2x64xf32>
    %57 = vector.extract_strided_slice %44 {offsets = [0, 192], sizes = [2, 64], strides = [1, 1]} : vector<2x256xf32> to vector<2x64xf32>
    %58 = math.tanh %57 : vector<2x64xf32>
    %59 = vector.extract_strided_slice %50 {offsets = [0, 0], sizes = [2, 64], strides = [1, 1]} : vector<2x128xf32> to vector<2x64xf32>
    %60 = vector.extract_strided_slice %50 {offsets = [0, 64], sizes = [2, 64], strides = [1, 1]} : vector<2x128xf32> to vector<2x64xf32>
    %61 = arith.mulf %60, %40 : vector<2x64xf32>
    %62 = arith.mulf %59, %58 : vector<2x64xf32>
    %63 = arith.addf %61, %62 : vector<2x64xf32>
    %64 = math.tanh %63 : vector<2x64xf32>
    %65 = arith.mulf %56, %64 : vector<2x64xf32>
    %66 = vector.extract_strided_slice %7 {offsets = [4, 0], sizes = [2, 256], strides = [1, 1]} : vector<16x256xf32> to vector<2x256xf32>
    %67 = arith.truncf %65 : vector<2x64xf32> to vector<2x64xbf16>
    %cst_12 = arith.constant dense<0.000000e+00> : vector<2x256xf32>
    %68 = tpu.matmul %67, %8, %cst_12 {dimension_numbers = #tpu.dot_dimension_numbers<[1], [0], [0], [1], [0, 0, 1, 1], [], []>} : vector<2x64xbf16>, vector<64x256xbf16>, vector<2x256xf32> -> vector<2x256xf32>
    %69 = arith.addf %66, %68 : vector<2x256xf32>
    %70 = vector.extract_strided_slice %69 {offsets = [0, 0], sizes = [2, 128], strides = [1, 1]} : vector<2x256xf32> to vector<2x128xf32>
    %71 = arith.negf %70 : vector<2x128xf32>
    %72 = math.exp %71 : vector<2x128xf32>
    %cst_13 = arith.constant 1.000000e+00 : f32
    %73 = vector.broadcast %cst_13 : f32 to vector<2x128xf32>
    %74 = arith.addf %73, %72 : vector<2x128xf32>
    %75 = arith.divf %73, %74 : vector<2x128xf32>
    %76 = vector.extract_strided_slice %69 {offsets = [0, 128], sizes = [2, 64], strides = [1, 1]} : vector<2x256xf32> to vector<2x64xf32>
    %77 = arith.negf %76 : vector<2x64xf32>
    %78 = math.exp %77 : vector<2x64xf32>
    %cst_14 = arith.constant 1.000000e+00 : f32
    %79 = vector.broadcast %cst_14 : f32 to vector<2x64xf32>
    %80 = arith.addf %79, %78 : vector<2x64xf32>
    %81 = arith.divf %79, %80 : vector<2x64xf32>
    %82 = vector.extract_strided_slice %69 {offsets = [0, 192], sizes = [2, 64], strides = [1, 1]} : vector<2x256xf32> to vector<2x64xf32>
    %83 = math.tanh %82 : vector<2x64xf32>
    %84 = vector.extract_strided_slice %75 {offsets = [0, 0], sizes = [2, 64], strides = [1, 1]} : vector<2x128xf32> to vector<2x64xf32>
    %85 = vector.extract_strided_slice %75 {offsets = [0, 64], sizes = [2, 64], strides = [1, 1]} : vector<2x128xf32> to vector<2x64xf32>
    %86 = arith.mulf %85, %63 : vector<2x64xf32>
    %87 = arith.mulf %84, %83 : vector<2x64xf32>
    %88 = arith.addf %86, %87 : vector<2x64xf32>
    %89 = math.tanh %88 : vector<2x64xf32>
    %90 = arith.mulf %81, %89 : vector<2x64xf32>
    %91 = vector.extract_strided_slice %7 {offsets = [6, 0], sizes = [2, 256], strides = [1, 1]} : vector<16x256xf32> to vector<2x256xf32>
    %92 = arith.truncf %90 : vector<2x64xf32> to vector<2x64xbf16>
    %cst_15 = arith.constant dense<0.000000e+00> : vector<2x256xf32>
    %93 = tpu.matmul %92, %8, %cst_15 {dimension_numbers = #tpu.dot_dimension_numbers<[1], [0], [0], [1], [0, 0, 1, 1], [], []>} : vector<2x64xbf16>, vector<64x256xbf16>, vector<2x256xf32> -> vector<2x256xf32>
    %94 = arith.addf %91, %93 : vector<2x256xf32>
    %95 = vector.extract_strided_slice %94 {offsets = [0, 0], sizes = [2, 128], strides = [1, 1]} : vector<2x256xf32> to vector<2x128xf32>
    %96 = arith.negf %95 : vector<2x128xf32>
    %97 = math.exp %96 : vector<2x128xf32>
    %cst_16 = arith.constant 1.000000e+00 : f32
    %98 = vector.broadcast %cst_16 : f32 to vector<2x128xf32>
    %99 = arith.addf %98, %97 : vector<2x128xf32>
    %100 = arith.divf %98, %99 : vector<2x128xf32>
    %101 = vector.extract_strided_slice %94 {offsets = [0, 128], sizes = [2, 64], strides = [1, 1]} : vector<2x256xf32> to vector<2x64xf32>
    %102 = arith.negf %101 : vector<2x64xf32>
    %103 = math.exp %102 : vector<2x64xf32>
    %cst_17 = arith.constant 1.000000e+00 : f32
    %104 = vector.broadcast %cst_17 : f32 to vector<2x64xf32>
    %105 = arith.addf %104, %103 : vector<2x64xf32>
    %106 = arith.divf %104, %105 : vector<2x64xf32>
    %107 = vector.extract_strided_slice %94 {offsets = [0, 192], sizes = [2, 64], strides = [1, 1]} : vector<2x256xf32> to vector<2x64xf32>
    %108 = math.tanh %107 : vector<2x64xf32>
    %109 = vector.extract_strided_slice %100 {offsets = [0, 0], sizes = [2, 64], strides = [1, 1]} : vector<2x128xf32> to vector<2x64xf32>
    %110 = vector.extract_strided_slice %100 {offsets = [0, 64], sizes = [2, 64], strides = [1, 1]} : vector<2x128xf32> to vector<2x64xf32>
    %111 = arith.mulf %110, %88 : vector<2x64xf32>
    %112 = arith.mulf %109, %108 : vector<2x64xf32>
    %113 = arith.addf %111, %112 : vector<2x64xf32>
    %114 = math.tanh %113 : vector<2x64xf32>
    %115 = arith.mulf %106, %114 : vector<2x64xf32>
    %116 = vector.extract_strided_slice %7 {offsets = [8, 0], sizes = [2, 256], strides = [1, 1]} : vector<16x256xf32> to vector<2x256xf32>
    %117 = arith.truncf %115 : vector<2x64xf32> to vector<2x64xbf16>
    %cst_18 = arith.constant dense<0.000000e+00> : vector<2x256xf32>
    %118 = tpu.matmul %117, %8, %cst_18 {dimension_numbers = #tpu.dot_dimension_numbers<[1], [0], [0], [1], [0, 0, 1, 1], [], []>} : vector<2x64xbf16>, vector<64x256xbf16>, vector<2x256xf32> -> vector<2x256xf32>
    %119 = arith.addf %116, %118 : vector<2x256xf32>
    %120 = vector.extract_strided_slice %119 {offsets = [0, 0], sizes = [2, 128], strides = [1, 1]} : vector<2x256xf32> to vector<2x128xf32>
    %121 = arith.negf %120 : vector<2x128xf32>
    %122 = math.exp %121 : vector<2x128xf32>
    %cst_19 = arith.constant 1.000000e+00 : f32
    %123 = vector.broadcast %cst_19 : f32 to vector<2x128xf32>
    %124 = arith.addf %123, %122 : vector<2x128xf32>
    %125 = arith.divf %123, %124 : vector<2x128xf32>
    %126 = vector.extract_strided_slice %119 {offsets = [0, 128], sizes = [2, 64], strides = [1, 1]} : vector<2x256xf32> to vector<2x64xf32>
    %127 = arith.negf %126 : vector<2x64xf32>
    %128 = math.exp %127 : vector<2x64xf32>
    %cst_20 = arith.constant 1.000000e+00 : f32
    %129 = vector.broadcast %cst_20 : f32 to vector<2x64xf32>
    %130 = arith.addf %129, %128 : vector<2x64xf32>
    %131 = arith.divf %129, %130 : vector<2x64xf32>
    %132 = vector.extract_strided_slice %119 {offsets = [0, 192], sizes = [2, 64], strides = [1, 1]} : vector<2x256xf32> to vector<2x64xf32>
    %133 = math.tanh %132 : vector<2x64xf32>
    %134 = vector.extract_strided_slice %125 {offsets = [0, 0], sizes = [2, 64], strides = [1, 1]} : vector<2x128xf32> to vector<2x64xf32>
    %135 = vector.extract_strided_slice %125 {offsets = [0, 64], sizes = [2, 64], strides = [1, 1]} : vector<2x128xf32> to vector<2x64xf32>
    %136 = arith.mulf %135, %113 : vector<2x64xf32>
    %137 = arith.mulf %134, %133 : vector<2x64xf32>
    %138 = arith.addf %136, %137 : vector<2x64xf32>
    %139 = math.tanh %138 : vector<2x64xf32>
    %140 = arith.mulf %131, %139 : vector<2x64xf32>
    %141 = vector.extract_strided_slice %7 {offsets = [10, 0], sizes = [2, 256], strides = [1, 1]} : vector<16x256xf32> to vector<2x256xf32>
    %142 = arith.truncf %140 : vector<2x64xf32> to vector<2x64xbf16>
    %cst_21 = arith.constant dense<0.000000e+00> : vector<2x256xf32>
    %143 = tpu.matmul %142, %8, %cst_21 {dimension_numbers = #tpu.dot_dimension_numbers<[1], [0], [0], [1], [0, 0, 1, 1], [], []>} : vector<2x64xbf16>, vector<64x256xbf16>, vector<2x256xf32> -> vector<2x256xf32>
    %144 = arith.addf %141, %143 : vector<2x256xf32>
    %145 = vector.extract_strided_slice %144 {offsets = [0, 0], sizes = [2, 128], strides = [1, 1]} : vector<2x256xf32> to vector<2x128xf32>
    %146 = arith.negf %145 : vector<2x128xf32>
    %147 = math.exp %146 : vector<2x128xf32>
    %cst_22 = arith.constant 1.000000e+00 : f32
    %148 = vector.broadcast %cst_22 : f32 to vector<2x128xf32>
    %149 = arith.addf %148, %147 : vector<2x128xf32>
    %150 = arith.divf %148, %149 : vector<2x128xf32>
    %151 = vector.extract_strided_slice %144 {offsets = [0, 128], sizes = [2, 64], strides = [1, 1]} : vector<2x256xf32> to vector<2x64xf32>
    %152 = arith.negf %151 : vector<2x64xf32>
    %153 = math.exp %152 : vector<2x64xf32>
    %cst_23 = arith.constant 1.000000e+00 : f32
    %154 = vector.broadcast %cst_23 : f32 to vector<2x64xf32>
    %155 = arith.addf %154, %153 : vector<2x64xf32>
    %156 = arith.divf %154, %155 : vector<2x64xf32>
    %157 = vector.extract_strided_slice %144 {offsets = [0, 192], sizes = [2, 64], strides = [1, 1]} : vector<2x256xf32> to vector<2x64xf32>
    %158 = math.tanh %157 : vector<2x64xf32>
    %159 = vector.extract_strided_slice %150 {offsets = [0, 0], sizes = [2, 64], strides = [1, 1]} : vector<2x128xf32> to vector<2x64xf32>
    %160 = vector.extract_strided_slice %150 {offsets = [0, 64], sizes = [2, 64], strides = [1, 1]} : vector<2x128xf32> to vector<2x64xf32>
    %161 = arith.mulf %160, %138 : vector<2x64xf32>
    %162 = arith.mulf %159, %158 : vector<2x64xf32>
    %163 = arith.addf %161, %162 : vector<2x64xf32>
    %164 = math.tanh %163 : vector<2x64xf32>
    %165 = arith.mulf %156, %164 : vector<2x64xf32>
    %166 = vector.extract_strided_slice %7 {offsets = [12, 0], sizes = [2, 256], strides = [1, 1]} : vector<16x256xf32> to vector<2x256xf32>
    %167 = arith.truncf %165 : vector<2x64xf32> to vector<2x64xbf16>
    %cst_24 = arith.constant dense<0.000000e+00> : vector<2x256xf32>
    %168 = tpu.matmul %167, %8, %cst_24 {dimension_numbers = #tpu.dot_dimension_numbers<[1], [0], [0], [1], [0, 0, 1, 1], [], []>} : vector<2x64xbf16>, vector<64x256xbf16>, vector<2x256xf32> -> vector<2x256xf32>
    %169 = arith.addf %166, %168 : vector<2x256xf32>
    %170 = vector.extract_strided_slice %169 {offsets = [0, 0], sizes = [2, 128], strides = [1, 1]} : vector<2x256xf32> to vector<2x128xf32>
    %171 = arith.negf %170 : vector<2x128xf32>
    %172 = math.exp %171 : vector<2x128xf32>
    %cst_25 = arith.constant 1.000000e+00 : f32
    %173 = vector.broadcast %cst_25 : f32 to vector<2x128xf32>
    %174 = arith.addf %173, %172 : vector<2x128xf32>
    %175 = arith.divf %173, %174 : vector<2x128xf32>
    %176 = vector.extract_strided_slice %169 {offsets = [0, 128], sizes = [2, 64], strides = [1, 1]} : vector<2x256xf32> to vector<2x64xf32>
    %177 = arith.negf %176 : vector<2x64xf32>
    %178 = math.exp %177 : vector<2x64xf32>
    %cst_26 = arith.constant 1.000000e+00 : f32
    %179 = vector.broadcast %cst_26 : f32 to vector<2x64xf32>
    %180 = arith.addf %179, %178 : vector<2x64xf32>
    %181 = arith.divf %179, %180 : vector<2x64xf32>
    %182 = vector.extract_strided_slice %169 {offsets = [0, 192], sizes = [2, 64], strides = [1, 1]} : vector<2x256xf32> to vector<2x64xf32>
    %183 = math.tanh %182 : vector<2x64xf32>
    %184 = vector.extract_strided_slice %175 {offsets = [0, 0], sizes = [2, 64], strides = [1, 1]} : vector<2x128xf32> to vector<2x64xf32>
    %185 = vector.extract_strided_slice %175 {offsets = [0, 64], sizes = [2, 64], strides = [1, 1]} : vector<2x128xf32> to vector<2x64xf32>
    %186 = arith.mulf %185, %163 : vector<2x64xf32>
    %187 = arith.mulf %184, %183 : vector<2x64xf32>
    %188 = arith.addf %186, %187 : vector<2x64xf32>
    %189 = math.tanh %188 : vector<2x64xf32>
    %190 = arith.mulf %181, %189 : vector<2x64xf32>
    %191 = vector.extract_strided_slice %7 {offsets = [14, 0], sizes = [2, 256], strides = [1, 1]} : vector<16x256xf32> to vector<2x256xf32>
    %192 = arith.truncf %190 : vector<2x64xf32> to vector<2x64xbf16>
    %cst_27 = arith.constant dense<0.000000e+00> : vector<2x256xf32>
    %193 = tpu.matmul %192, %8, %cst_27 {dimension_numbers = #tpu.dot_dimension_numbers<[1], [0], [0], [1], [0, 0, 1, 1], [], []>} : vector<2x64xbf16>, vector<64x256xbf16>, vector<2x256xf32> -> vector<2x256xf32>
    %194 = arith.addf %191, %193 : vector<2x256xf32>
    %195 = vector.extract_strided_slice %194 {offsets = [0, 0], sizes = [2, 128], strides = [1, 1]} : vector<2x256xf32> to vector<2x128xf32>
    %196 = arith.negf %195 : vector<2x128xf32>
    %197 = math.exp %196 : vector<2x128xf32>
    %cst_28 = arith.constant 1.000000e+00 : f32
    %198 = vector.broadcast %cst_28 : f32 to vector<2x128xf32>
    %199 = arith.addf %198, %197 : vector<2x128xf32>
    %200 = arith.divf %198, %199 : vector<2x128xf32>
    %201 = vector.extract_strided_slice %194 {offsets = [0, 128], sizes = [2, 64], strides = [1, 1]} : vector<2x256xf32> to vector<2x64xf32>
    %202 = arith.negf %201 : vector<2x64xf32>
    %203 = math.exp %202 : vector<2x64xf32>
    %cst_29 = arith.constant 1.000000e+00 : f32
    %204 = vector.broadcast %cst_29 : f32 to vector<2x64xf32>
    %205 = arith.addf %204, %203 : vector<2x64xf32>
    %206 = arith.divf %204, %205 : vector<2x64xf32>
    %207 = vector.extract_strided_slice %194 {offsets = [0, 192], sizes = [2, 64], strides = [1, 1]} : vector<2x256xf32> to vector<2x64xf32>
    %208 = math.tanh %207 : vector<2x64xf32>
    %209 = vector.extract_strided_slice %200 {offsets = [0, 0], sizes = [2, 64], strides = [1, 1]} : vector<2x128xf32> to vector<2x64xf32>
    %210 = vector.extract_strided_slice %200 {offsets = [0, 64], sizes = [2, 64], strides = [1, 1]} : vector<2x128xf32> to vector<2x64xf32>
    %211 = arith.mulf %210, %188 : vector<2x64xf32>
    %212 = arith.mulf %209, %208 : vector<2x64xf32>
    %213 = arith.addf %211, %212 : vector<2x64xf32>
    %214 = math.tanh %213 : vector<2x64xf32>
    %215 = arith.mulf %206, %214 : vector<2x64xf32>
    %216 = arith.truncf %215 : vector<2x64xf32> to vector<2x64xbf16>
    %c0_30 = arith.constant 0 : index
    %c0_31 = arith.constant 0 : index
    %217 = vector.load %arg5[%c0_30, %c0_31] : memref<64x128xbf16, #tpu.memory_space<vmem>>, vector<64x128xbf16>
    %cst_32 = arith.constant dense<0.000000e+00> : vector<2x128xf32>
    %218 = tpu.matmul %216, %217, %cst_32 {dimension_numbers = #tpu.dot_dimension_numbers<[1], [0], [0], [1], [0, 0, 1, 1], [], []>} : vector<2x64xbf16>, vector<64x128xbf16>, vector<2x128xf32> -> vector<2x128xf32>
    %c0_33 = arith.constant 0 : index
    %c0_34 = arith.constant 0 : index
    %219 = vector.load %arg6[%c0_33, %c0_34] : memref<1x128xf32, #tpu.memory_space<vmem>>, vector<1x128xf32>
    %220 = vector.broadcast %219 : vector<1x128xf32> to vector<2x128xf32>
    %221 = arith.addf %218, %220 : vector<2x128xf32>
    %222 = arith.negf %221 : vector<2x128xf32>
    %223 = math.exp %222 : vector<2x128xf32>
    %cst_35 = arith.constant 1.000000e+00 : f32
    %224 = vector.broadcast %cst_35 : f32 to vector<2x128xf32>
    %225 = arith.addf %224, %223 : vector<2x128xf32>
    %226 = arith.divf %224, %225 : vector<2x128xf32>
    %227 = vector.extract_strided_slice %226 {offsets = [0, 0], sizes = [2, 32], strides = [1, 1]} : vector<2x128xf32> to vector<2x32xf32>
    %228 = vector.extract_strided_slice %226 {offsets = [0, 32], sizes = [2, 32], strides = [1, 1]} : vector<2x128xf32> to vector<2x32xf32>
    %229 = vector.extract_strided_slice %226 {offsets = [0, 96], sizes = [2, 32], strides = [1, 1]} : vector<2x128xf32> to vector<2x32xf32>
    %230 = vector.extract_strided_slice %221 {offsets = [0, 64], sizes = [2, 32], strides = [1, 1]} : vector<2x128xf32> to vector<2x32xf32>
    %231 = math.tanh %230 : vector<2x32xf32>
    %232 = vector.extract_strided_slice %213 {offsets = [0, 32], sizes = [2, 32], strides = [1, 1]} : vector<2x64xf32> to vector<2x32xf32>
    %233 = arith.mulf %228, %232 : vector<2x32xf32>
    %234 = arith.mulf %227, %231 : vector<2x32xf32>
    %235 = arith.addf %233, %234 : vector<2x32xf32>
    %236 = math.tanh %235 : vector<2x32xf32>
    %237 = arith.mulf %229, %236 : vector<2x32xf32>
    %c0_36 = arith.constant 0 : index
    %c0_37 = arith.constant 0 : index
    %238 = vector.load %arg7[%c0_36, %c0_37] : memref<1x32xf32, #tpu.memory_space<vmem>>, vector<1x32xf32>
    %239 = vector.broadcast %238 : vector<1x32xf32> to vector<2x32xf32>
    %240 = arith.mulf %237, %239 : vector<2x32xf32>
    %cst_38 = arith.constant dense<0.000000e+00> : vector<2xf32>
    %241 = vector.multi_reduction <add>, %240, %cst_38 [1] : vector<2x32xf32> to vector<2xf32>
    %242 = vector.shape_cast %241 : vector<2xf32> to vector<2x1xf32>
    %c0_39 = arith.constant 0 : index
    %c0_40 = arith.constant 0 : index
    %243 = vector.load %arg8[%c0_39, %c0_40] : memref<1x1xf32, #tpu.memory_space<vmem>>, vector<1x1xf32>
    %244 = vector.broadcast %243 : vector<1x1xf32> to vector<2x1xf32>
    %245 = arith.addf %242, %244 : vector<2x1xf32>
    %c0_41 = arith.constant 0 : index
    %c0_42 = arith.constant 0 : index
    %246 = vector.load %arg9[%c0_41, %c0_42] : memref<2x1xf32, #tpu.memory_space<vmem>>, vector<2x1xf32>
    tpu.vector_store %arg9[%c0_41, %c0_42], %245 {strides = array<i32>} : memref<2x1xf32, #tpu.memory_space<vmem>>, vector<2x1xf32>,
    return
  }
  func.func @transform_0(%arg0: i32) -> (i32, i32) {
    %c0_i32 = arith.constant 0 : i32
    %c0_i32_0 = arith.constant 0 : i32
    %c0_i32_1 = arith.constant 0 : i32
    return %c0_i32, %c0_i32_0 : i32, i32
  }
  func.func @transform_1(%arg0: i32) -> (i32, i32) {
    %c0_i32 = arith.constant 0 : i32
    %c0_i32_0 = arith.constant 0 : i32
    %c0_i32_1 = arith.constant 0 : i32
    return %c0_i32, %c0_i32_0 : i32, i32
  }
  func.func @transform_2(%arg0: i32) -> (i32, i32) {
    %c0_i32 = arith.constant 0 : i32
    %c0_i32_0 = arith.constant 0 : i32
    %c0_i32_1 = arith.constant 0 : i32
    return %c0_i32, %c0_i32_0 : i32, i32
  }
  func.func @transform_3(%arg0: i32) -> (i32, i32) {
    %c0_i32 = arith.constant 0 : i32
    %c0_i32_0 = arith.constant 0 : i32
    %c0_i32_1 = arith.constant 0 : i32
    return %c0_i32, %c0_i32_0 : i32, i32
  }
  func.func @transform_4(%arg0: i32) -> (i32, i32) {
    %c0_i32 = arith.constant 0 : i32
    %c0_i32_0 = arith.constant 0 : i32
    %c0_i32_1 = arith.constant 0 : i32
    return %c0_i32, %c0_i32_0 : i32, i32
  }
  func.func @transform_5(%arg0: i32) -> (i32, i32) {
    %c0_i32 = arith.constant 0 : i32
    %c0_i32_0 = arith.constant 0 : i32
    %c0_i32_1 = arith.constant 0 : i32
    return %c0_i32, %c0_i32_0 : i32, i32
  }
  func.func @transform_6(%arg0: i32) -> (i32, i32) {
    %c0_i32 = arith.constant 0 : i32
    %c0_i32_0 = arith.constant 0 : i32
    %c0_i32_1 = arith.constant 0 : i32
    return %c0_i32, %c0_i32_0 : i32, i32
  }
  func.func @transform_7(%arg0: i32) -> (i32, i32) {
    %c0_i32 = arith.constant 0 : i32
    %c0_i32_0 = arith.constant 0 : i32
    %c0_i32_1 = arith.constant 0 : i32
    return %c0_i32, %c0_i32_0 : i32, i32
  }
  func.func @transform_8(%arg0: i32) -> (i32, i32) {
    %c0_i32 = arith.constant 0 : i32
    %c0_i32_0 = arith.constant 0 : i32
    %c0_i32_1 = arith.constant 0 : i32
    return %c0_i32, %c0_i32_0 : i32, i32
  }
}

</mosaic_0001>

<llo_original>
// kernel: tpu_custom_call.1
$region0: #{tpu_custom_call.1}
  #allocation0 [shape = 'u32[]', space=smem, size = 0x4, offset = 0x4, fixed_abs, tag = 'smem constant byte address 0x4 - core index']
  #allocation1 [shape = 'u32[144,128]{1,0:T(1,128)}', space=vmem, size = 0x12000, scoped, tag = 'internal scratch']
  #allocation2 [shape = 'f32[1,1]{1,0:T(1,128)S(1)}', space=vmem, size = 0x200, scoped, tag = 'scoped memory for tpu_custom_call.1']
  %s0 = inlined_call_operand.vmem [shape: f32[16,1], index: 0, kind: input, shape index: {}]
  %s1 = inlined_call_operand.vmem [shape: f32[1,256], index: 1, kind: input, shape index: {}]
  %s2 = inlined_call_operand.hbm [shape: f32[1,256], index: 2, kind: input, shape index: {}]
  %s3 = inlined_call_operand.hbm [shape: bf16[64,256], index: 3, kind: input, shape index: {}]
  %s4 = inlined_call_operand.vmem [shape: bf16[64,128], index: 4, kind: input, shape index: {}]
  %s5 = inlined_call_operand.vmem [shape: f32[1,128], index: 5, kind: input, shape index: {}]
  %s6 = inlined_call_operand.vmem [shape: f32[1,32], index: 6, kind: input, shape index: {}]
  %s7 = inlined_call_operand.<no memory space> [shape: f32[1,1], index: 7, kind: input, shape index: {}]
  %s8 = inlined_call_operand.vmem [shape: f32[2,1], index: 8, kind: output, shape index: {}]
  %s9 = sld [smem:[#allocation0]]
  $region50: #{tpu_custom_call.1} parent=0
    _
  %s11 = ssub.s32 1, %s9
  %s12 = scalar_select 0, %s11, %s9
  %v13 = vstv %s7
  %14 = vst [vmem:[#allocation2] sm:$0x1] %v13
  $region1: #{tpu_custom_call.1} parent=0
    #allocation3 [shape = 'u8[1024]{0}', space=vmem, size = 0x400, scoped, tag = 'input window, operand 2, single buffered']
    #allocation4 [shape = 's32[1]{0}', space=sflag, size = 0x4, scoped, tag = 'scoped memory for tpu_custom_call.1']
    #allocation5 [shape = 'u8[32768]{0}', space=vmem, size = 0x8000, scoped, tag = 'input window, operand 3, single buffered']
    #allocation6 [shape = 's32[1]{0}', space=sflag, size = 0x4, scoped, tag = 'scoped memory for tpu_custom_call.1']
    %15 = vsyncpa [#allocation4], 0
    %16 = vsyncpa [#allocation6], 0
    // Predicated region
    $region2: #{tpu_custom_call.1} parent=1 // pred_check
      _
    $region3: #{tpu_custom_call.1} parent=1 // pred_check_branch
      %18 = sbr.rel (0) target = $region5
    $region4: #{tpu_custom_call.1} parent=1 // pred_region
      _
    $region5: #{tpu_custom_call.1} parent=1 // pred_fallthru
      _
    // Predicated region
    $region6: #{tpu_custom_call.1} parent=1 // pred_check
      _
    $region7: #{tpu_custom_call.1} parent=1 // pred_check_branch
      %20 = sbr.rel (0) target = $region9
    $region8: #{tpu_custom_call.1} parent=1 // pred_region
      _
    $region9: #{tpu_custom_call.1} parent=1 // pred_fallthru
      _
    // Predicated region
    $region10: #{tpu_custom_call.1} parent=1 // pred_check
      _
    $region11: #{tpu_custom_call.1} parent=1 // pred_check_branch
      %22 = sbr.rel (0) target = $region13
    $region12: #{tpu_custom_call.1} parent=1 // pred_region
      %s24 = ssub.s32 32, 32
      %25 = vsyncadd [#allocation4], %s24
      %s27 = sshll.u32 [#allocation3], 4
      %s28 = int_to_ptr.vmem [resolvable:$true] %s27
      %30 = dma.hbm_to_vmem [thread:$0]  %s2, 32, %s28, [#allocation4]
    $region13: #{tpu_custom_call.1} parent=1 // pred_fallthru
      _
    // Predicated region
    $region14: #{tpu_custom_call.1} parent=1 // pred_check
      _
    $region15: #{tpu_custom_call.1} parent=1 // pred_check_branch
      %32 = sbr.rel (0) target = $region17
    $region16: #{tpu_custom_call.1} parent=1 // pred_region
      %s34 = ssub.s32 1024, 1024
      %35 = vsyncadd [#allocation6], %s34
      %s36 = sshll.u32 [#allocation5], 4
      %s37 = int_to_ptr.vmem [resolvable:$true] %s36
      %42 = dma.hbm_to_vmem [thread:$0]  %s3, 1024, %s37, [#allocation6], 128, 128, 8
    $region17: #{tpu_custom_call.1} parent=1 // pred_fallthru
      _
    // Predicated region
    $region18: #{tpu_custom_call.1} parent=1 // pred_check
      _
    $region19: #{tpu_custom_call.1} parent=1 // pred_check_branch
      %44 = sbr.rel (0) target = $region21
    $region20: #{tpu_custom_call.1} parent=1 // pred_region
      _
    $region21: #{tpu_custom_call.1} parent=1 // pred_fallthru
      _
    // Predicated region
    $region22: #{tpu_custom_call.1} parent=1 // pred_check
      _
    $region23: #{tpu_custom_call.1} parent=1 // pred_check_branch
      %46 = sbr.rel (0) target = $region25
    $region24: #{tpu_custom_call.1} parent=1 // pred_region
      _
    $region25: #{tpu_custom_call.1} parent=1 // pred_fallthru
      _
    // Predicated region
    $region26: #{tpu_custom_call.1} parent=1 // pred_check
      _
    $region27: #{tpu_custom_call.1} parent=1 // pred_check_branch
      %48 = sbr.rel (0) target = $region29
    $region28: #{tpu_custom_call.1} parent=1 // pred_region
      _
    $region29: #{tpu_custom_call.1} parent=1 // pred_fallthru
      _
    // Predicated region
    $region30: #{tpu_custom_call.1} parent=1 // pred_check
      _
    $region31: #{tpu_custom_call.1} parent=1 // pred_check_branch
      %50 = sbr.rel (0) target = $region33
    $region32: #{tpu_custom_call.1} parent=1 // pred_region
      _
    $region33: #{tpu_custom_call.1} parent=1 // pred_fallthru
      _
    // Predicated region
    $region34: #{tpu_custom_call.1} parent=1 // pred_check
      _
    $region35: #{tpu_custom_call.1} parent=1 // pred_check_branch
      %52 = sbr.rel (0) target = $region37
    $region36: #{tpu_custom_call.1} parent=1 // pred_region
      %53 = dma.done [#allocation4], 32
    $region37: #{tpu_custom_call.1} parent=1 // pred_fallthru
      _
    // Predicated region
    $region38: #{tpu_custom_call.1} parent=1 // pred_check
      _
    $region39: #{tpu_custom_call.1} parent=1 // pred_check_branch
      %55 = sbr.rel (0) target = $region41
    $region40: #{tpu_custom_call.1} parent=1 // pred_region
      %56 = dma.done [#allocation6], 1024
    $region41: #{tpu_custom_call.1} parent=1 // pred_fallthru
      _
    %v58 = vld [vmem:[%s0] sm:$0xff]
    %v59 = vld [vmem:[%s0 + $0x8] sm:$0xff]
    %v60 = vld [vmem:[%s1] sm:$0x3]
    %62 = vset.pattern.permute.xlu0 0
    %63 = vperm.xlu0 %62, %v58
    %v64 = vpop.permute.xlu0 %63
    %67 = vset.pattern.permute.xlu0 0
    %68 = vperm.xlu0 %67, %v59
    %v69 = vpop.permute.xlu0 %68
    %v72 = vlaneseq
    %v73 = vshrl.u32 %v72, 7
    %v74 = vsub.s32 0, %v73
    %v75 = vrot.slane %v60, %v74
    %v76 = vlaneseq
    %v77 = vshrl.u32 %v76, 7
    %v78 = vsub.s32 1, %v77
    %v79 = vrot.slane %v60, %v78
    %v82 = vmul.f32 %v64, %v75
    %v83 = vmul.f32 %v64, %v79
    %v84 = vmul.f32 %v69, %v75
    %v85 = vmul.f32 %v69, %v79
    %v86 = vld [vmem:[#allocation3] sm:$0x3]
    %v88 = vlaneseq
    %v89 = vshrl.u32 %v88, 7
    %v90 = vsub.s32 0, %v89
    %v91 = vrot.slane %v86, %v90
    %v92 = vlaneseq
    %v93 = vshrl.u32 %v92, 7
    %v94 = vsub.s32 1, %v93
    %v95 = vrot.slane %v86, %v94
    %v98 = vadd.f32 %v82, %v91
    %v99 = vadd.f32 %v83, %v95
    %v100 = vadd.f32 %v84, %v91
    %v101 = vadd.f32 %v85, %v95
    %v102 = vld [vmem:[#allocation5] sm:$0xff]
    %v103 = vld [vmem:[#allocation5 + $0x8] sm:$0xff]
    %v104 = vld [vmem:[#allocation5 + $0x10] sm:$0xff]
    %v105 = vld [vmem:[#allocation5 + $0x18] sm:$0xff]
    %v106 = vld [vmem:[#allocation5 + $0x20] sm:$0xff]
    %v107 = vld [vmem:[#allocation5 + $0x28] sm:$0xff]
    %v108 = vld [vmem:[#allocation5 + $0x30] sm:$0xff]
    %v109 = vld [vmem:[#allocation5 + $0x38] sm:$0xff]
    %v110 = vlaneseq
    %v111 = vand.u32 %v110, 127
    %vm112 = vcmp.lt.s32.totalorder %v111, 32
    %v113 = vsel %vm112, 1, 0
    %v114 = vcvt.s32.f32 %v113
    %v115 = vxor.u32 %v98, 2147483648
    %v116 = vmul.f32 %v115, 1.442695
    %v117 = vpow.pop %v116
    %v118 = vadd.f32 %v117, 1.0
    %v119 = vrcp.pop %v118
    %v120 = vmul.f32 1.0, %v119
    %v121 = vxor.u32 %v99, 2147483648
    %v122 = vmul.f32 %v121, 1.442695
    %v123 = vpow.pop %v122
    %v124 = vadd.f32 %v123, 1.0
    %v125 = vrcp.pop %v124
    %v126 = vmul.f32 1.0, %v125
    %v127 = vtanh.pop %v99
    %v128 = vmul.f32 %v120, 0.0
    %130 = vrot.lane.b32.xlu0 %v127, 64
    %v131 = vpop.permute.xlu0 %130
    %v133 = vmul.f32 %v120, %v131
    %135 = vrot.lane.b32.xlu0 %v133, 64
    %v136 = vpop.permute.xlu0 %135
    %v138 = vadd.f32 %v128, %v136
    %v139 = vtanh.pop %v138
    %141 = vrot.lane.b32.xlu0 %v139, 64
    %v142 = vpop.permute.xlu0 %141
    %v144 = vmul.f32 %v126, %v142
    %v145 = vmul.f32 %v144, %v114
    %147 = vrot.lane.b32.xlu0 %v114, 64
    %v148 = vpop.permute.xlu0 %147
    %v150 = vmul.f32 %v138, %v148
    %v151 = vpack.c.bf16 %v145, %v145
    %v160 = vunpack.c.l.b16 %v102
    %v161 = vunpack.c.h.b16 %v102
    %v162 = vunpack.c.l.b16 %v103
    %v163 = vunpack.c.h.b16 %v103
    %v164 = vunpack.c.l.b16 %v104
    %v165 = vunpack.c.h.b16 %v104
    %v166 = vunpack.c.l.b16 %v105
    %v167 = vunpack.c.h.b16 %v105
    %v168 = vunpack.c.l.b16 %v106
    %v169 = vunpack.c.h.b16 %v106
    %v170 = vunpack.c.l.b16 %v107
    %v171 = vunpack.c.h.b16 %v107
    %v172 = vunpack.c.l.b16 %v108
    %v173 = vunpack.c.h.b16 %v108
    %v174 = vunpack.c.l.b16 %v109
    %v175 = vunpack.c.h.b16 %v109
    %v176 = vpack.c.b16 %v162, %v160
    %v177 = vpack.c.b16 %v163, %v161
    %v178 = vpack.c.b16 %v166, %v164
    %v179 = vpack.c.b16 %v167, %v165
    %v180 = vpack.c.b16 %v170, %v168
    %v181 = vpack.c.b16 %v171, %v169
    %v182 = vpack.c.b16 %v174, %v172
    %v183 = vpack.c.b16 %v175, %v173
    %vm192 = vcmask 523264
    %v194 = vsel %vm192, %v151, 0
    %196 = vmatprep.subr.bf16.mxu0 %v177
    %197 = vmatpush1.bf16.msra.mxu0 %v176
    %198 = vmatprep.subr.bf16.mxu0 %v179
    %199 = vmatpush1.bf16.msra.mxu0 %v178
    %200 = vmatprep.subr.bf16.mxu0 %v181
    %201 = vmatpush1.bf16.msra.mxu0 %v180
    %202 = vmatprep.subr.bf16.mxu0 %v183
    %203 = vmatpush1.bf16.msra.mxu0 %v182
    %204 = vmatprep.subr.bf16.mxu0 0
    %205 = vmatpush1.bf16.msra.mxu0 0
    %206 = vmatprep.subr.bf16.mxu0 0
    %207 = vmatpush1.bf16.msra.mxu0 0
    %208 = vmatprep.subr.bf16.mxu0 0
    %209 = vmatpush1.bf16.msra.mxu0 0
    %210 = vmatprep.subr.bf16.mxu0 0
    %211 = vmatpush1.bf16.msra.mxu0 0
    %212 = vmatprep.subr.bf16.mxu0 0
    %213 = vmatpush1.bf16.msra.mxu0 0
    %214 = vmatprep.subr.bf16.mxu0 0
    %215 = vmatpush1.bf16.msra.mxu0 0
    %216 = vmatprep.subr.bf16.mxu0 0
    %217 = vmatpush1.bf16.msra.mxu0 0
    %218 = vmatprep.subr.bf16.mxu0 0
    %219 = vmatpush1.bf16.msra.mxu0 0
    %220 = vmatprep.subr.bf16.mxu0 0
    %221 = vmatpush1.bf16.msra.mxu0 0
    %222 = vmatprep.subr.bf16.mxu0 0
    %223 = vmatpush1.bf16.msra.mxu0 0
    %224 = vmatprep.subr.bf16.mxu0 0
    %225 = vmatpush1.bf16.msra.mxu0 0
    %226 = vmatprep.subr.bf16.mxu0 0
    %227 = vmatpush1.bf16.msra.mxu0 0
    %228 = vmatprep.mubr.bf16.mxu0 0
    %229 = vmatmul.mubr.bf16.gmra.mrb[0].mxu0 %v194
    %v230 = vpop.f32.mrb[0].mxu0
    %v231 = vadd.f32 0.0, %v230
    %v232 = vpop.f32.mrb[0].mxu0
    %v233 = vadd.f32 0.0, %v232
    %v234 = vpop.f32.mrb[0].mxu0
    %v235 = vpop.f32.mrb[0].mxu0
    %236 = vdwg.mxu0
    %v239 = vrot.slane %v231, 6
    %v240 = vrot.slane %v233, 6
    %v243 = vadd.f32 %v98, %v239
    %v244 = vadd.f32 %v99, %v240
    %v245 = vxor.u32 %v243, 2147483648
    %v246 = vmul.f32 %v245, 1.442695
    %v247 = vpow.pop %v246
    %v248 = vadd.f32 %v247, 1.0
    %v249 = vrcp.pop %v248
    %v250 = vmul.f32 1.0, %v249
    %v251 = vxor.u32 %v244, 2147483648
    %v252 = vmul.f32 %v251, 1.442695
    %v253 = vpow.pop %v252
    %v254 = vadd.f32 %v253, 1.0
    %v255 = vrcp.pop %v254
    %v256 = vmul.f32 1.0, %v255
    %v257 = vtanh.pop %v244
    %v259 = vrot.slane %v150, 6
    %v261 = vmul.f32 %v250, %v259
    %263 = vrot.lane.b32.xlu0 %v257, 64
    %v264 = vpop.permute.xlu0 %263
    %v266 = vmul.f32 %v250, %v264
    %268 = vrot.lane.b32.xlu0 %v266, 64
    %v269 = vpop.permute.xlu0 %268
    %v271 = vadd.f32 %v261, %v269
    %v272 = vtanh.pop %v271
    %274 = vrot.lane.b32.xlu0 %v272, 64
    %v275 = vpop.permute.xlu0 %274
    %v277 = vmul.f32 %v256, %v275
    %v278 = vpack.c.bf16 %v277, %v277
    %v280 = vrot.slane %v278, 1
    %v282 = vsel %vm192, %v280, 0
    %284 = vmatprep.subr.bf16.mxu0 %v177
    %285 = vmatpush1.bf16.msra.mxu0 %v176
    %286 = vmatprep.subr.bf16.mxu0 %v179
    %287 = vmatpush1.bf16.msra.mxu0 %v178
    %288 = vmatprep.subr.bf16.mxu0 %v181
    %289 = vmatpush1.bf16.msra.mxu0 %v180
    %290 = vmatprep.subr.bf16.mxu0 %v183
    %291 = vmatpush1.bf16.msra.mxu0 %v182
    %292 = vmatprep.subr.bf16.mxu0 0
    %293 = vmatpush1.bf16.msra.mxu0 0
    %294 = vmatprep.subr.bf16.mxu0 0
    %295 = vmatpush1.bf16.msra.mxu0 0
    %296 = vmatprep.subr.bf16.mxu0 0
    %297 = vmatpush1.bf16.msra.mxu0 0
    %298 = vmatprep.subr.bf16.mxu0 0
    %299 = vmatpush1.bf16.msra.mxu0 0
    %300 = vmatprep.subr.bf16.mxu0 0
    %301 = vmatpush1.bf16.msra.mxu0 0
    %302 = vmatprep.subr.bf16.mxu0 0
    %303 = vmatpush1.bf16.msra.mxu0 0
    %304 = vmatprep.subr.bf16.mxu0 0
    %305 = vmatpush1.bf16.msra.mxu0 0
    %306 = vmatprep.subr.bf16.mxu0 0
    %307 = vmatpush1.bf16.msra.mxu0 0
    %308 = vmatprep.subr.bf16.mxu0 0
    %309 = vmatpush1.bf16.msra.mxu0 0
    %310 = vmatprep.subr.bf16.mxu0 0
    %311 = vmatpush1.bf16.msra.mxu0 0
    %312 = vmatprep.subr.bf16.mxu0 0
    %313 = vmatpush1.bf16.msra.mxu0 0
    %314 = vmatprep.subr.bf16.mxu0 0
    %315 = vmatpush1.bf16.msra.mxu0 0
    %316 = vmatprep.mubr.bf16.mxu0 0
    %317 = vmatmul.mubr.bf16.gmra.mrb[0].mxu0 %v282
    %v318 = vpop.f32.mrb[0].mxu0
    %v319 = vadd.f32 0.0, %v318
    %v320 = vpop.f32.mrb[0].mxu0
    %v321 = vadd.f32 0.0, %v320
    %v322 = vpop.f32.mrb[0].mxu0
    %v323 = vpop.f32.mrb[0].mxu0
    %324 = vdwg.mxu0
    %v327 = vrot.slane %v319, 4
    %v328 = vrot.slane %v321, 4
    %v331 = vadd.f32 %v98, %v327
    %v332 = vadd.f32 %v99, %v328
    %v333 = vxor.u32 %v331, 2147483648
    %v334 = vmul.f32 %v333, 1.442695
    %v335 = vpow.pop %v334
    %v336 = vadd.f32 %v335, 1.0
    %v337 = vrcp.pop %v336
    %v338 = vmul.f32 1.0, %v337
    %v339 = vxor.u32 %v332, 2147483648
    %v340 = vmul.f32 %v339, 1.442695
    %v341 = vpow.pop %v340
    %v342 = vadd.f32 %v341, 1.0
    %v343 = vrcp.pop %v342
    %v344 = vmul.f32 1.0, %v343
    %v345 = vtanh.pop %v332
    %v347 = vrot.slane %v271, 6
    %v349 = vmul.f32 %v338, %v347
    %351 = vrot.lane.b32.xlu0 %v345, 64
    %v352 = vpop.permute.xlu0 %351
    %v354 = vmul.f32 %v338, %v352
    %356 = vrot.lane.b32.xlu0 %v354, 64
    %v357 = vpop.permute.xlu0 %356
    %v359 = vadd.f32 %v349, %v357
    %v360 = vtanh.pop %v359
    %362 = vrot.lane.b32.xlu0 %v360, 64
    %v363 = vpop.permute.xlu0 %362
    %v365 = vmul.f32 %v344, %v363
    %v366 = vpack.c.bf16 %v365, %v365
    %v368 = vrot.slane %v366, 2
    %v370 = vsel %vm192, %v368, 0
    %372 = vmatprep.subr.bf16.mxu0 %v177
    %373 = vmatpush1.bf16.msra.mxu0 %v176
    %374 = vmatprep.subr.bf16.mxu0 %v179
    %375 = vmatpush1.bf16.msra.mxu0 %v178
    %376 = vmatprep.subr.bf16.mxu0 %v181
    %377 = vmatpush1.bf16.msra.mxu0 %v180
    %378 = vmatprep.subr.bf16.mxu0 %v183
    %379 = vmatpush1.bf16.msra.mxu0 %v182
    %380 = vmatprep.subr.bf16.mxu0 0
    %381 = vmatpush1.bf16.msra.mxu0 0
    %382 = vmatprep.subr.bf16.mxu0 0
    %383 = vmatpush1.bf16.msra.mxu0 0
    %384 = vmatprep.subr.bf16.mxu0 0
    %385 = vmatpush1.bf16.msra.mxu0 0
    %386 = vmatprep.subr.bf16.mxu0 0
    %387 = vmatpush1.bf16.msra.mxu0 0
    %388 = vmatprep.subr.bf16.mxu0 0
    %389 = vmatpush1.bf16.msra.mxu0 0
    %390 = vmatprep.subr.bf16.mxu0 0
    %391 = vmatpush1.bf16.msra.mxu0 0
    %392 = vmatprep.subr.bf16.mxu0 0
    %393 = vmatpush1.bf16.msra.mxu0 0
    %394 = vmatprep.subr.bf16.mxu0 0
    %395 = vmatpush1.bf16.msra.mxu0 0
    %396 = vmatprep.subr.bf16.mxu0 0
    %397 = vmatpush1.bf16.msra.mxu0 0
    %398 = vmatprep.subr.bf16.mxu0 0
    %399 = vmatpush1.bf16.msra.mxu0 0
    %400 = vmatprep.subr.bf16.mxu0 0
    %401 = vmatpush1.bf16.msra.mxu0 0
    %402 = vmatprep.subr.bf16.mxu0 0
    %403 = vmatpush1.bf16.msra.mxu0 0
    %404 = vmatprep.mubr.bf16.mxu0 0
    %405 = vmatmul.mubr.bf16.gmra.mrb[0].mxu0 %v370
    %v406 = vpop.f32.mrb[0].mxu0
    %v407 = vadd.f32 0.0, %v406
    %v408 = vpop.f32.mrb[0].mxu0
    %v409 = vadd.f32 0.0, %v408
    %v410 = vpop.f32.mrb[0].mxu0
    %v411 = vpop.f32.mrb[0].mxu0
    %412 = vdwg.mxu0
    %v415 = vrot.slane %v407, 2
    %v416 = vrot.slane %v409, 2
    %v419 = vadd.f32 %v98, %v415
    %v420 = vadd.f32 %v99, %v416
    %v421 = vxor.u32 %v419, 2147483648
    %v422 = vmul.f32 %v421, 1.442695
    %v423 = vpow.pop %v422
    %v424 = vadd.f32 %v423, 1.0
    %v425 = vrcp.pop %v424
    %v426 = vmul.f32 1.0, %v425
    %v427 = vxor.u32 %v420, 2147483648
    %v428 = vmul.f32 %v427, 1.442695
    %v429 = vpow.pop %v428
    %v430 = vadd.f32 %v429, 1.0
    %v431 = vrcp.pop %v430
    %v432 = vmul.f32 1.0, %v431
    %v433 = vtanh.pop %v420
    %v435 = vrot.slane %v359, 6
    %v437 = vmul.f32 %v426, %v435
    %439 = vrot.lane.b32.xlu0 %v433, 64
    %v440 = vpop.permute.xlu0 %439
    %v442 = vmul.f32 %v426, %v440
    %444 = vrot.lane.b32.xlu0 %v442, 64
    %v445 = vpop.permute.xlu0 %444
    %v447 = vadd.f32 %v437, %v445
    %v448 = vtanh.pop %v447
    %450 = vrot.lane.b32.xlu0 %v448, 64
    %v451 = vpop.permute.xlu0 %450
    %v453 = vmul.f32 %v432, %v451
    %v454 = vpack.c.bf16 %v453, %v453
    %v456 = vrot.slane %v454, 3
    %v458 = vsel %vm192, %v456, 0
    %460 = vmatprep.subr.bf16.mxu0 %v177
    %461 = vmatpush1.bf16.msra.mxu0 %v176
    %462 = vmatprep.subr.bf16.mxu0 %v179
    %463 = vmatpush1.bf16.msra.mxu0 %v178
    %464 = vmatprep.subr.bf16.mxu0 %v181
    %465 = vmatpush1.bf16.msra.mxu0 %v180
    %466 = vmatprep.subr.bf16.mxu0 %v183
    %467 = vmatpush1.bf16.msra.mxu0 %v182
    %468 = vmatprep.subr.bf16.mxu0 0
    %469 = vmatpush1.bf16.msra.mxu0 0
    %470 = vmatprep.subr.bf16.mxu0 0
    %471 = vmatpush1.bf16.msra.mxu0 0
    %472 = vmatprep.subr.bf16.mxu0 0
    %473 = vmatpush1.bf16.msra.mxu0 0
    %474 = vmatprep.subr.bf16.mxu0 0
    %475 = vmatpush1.bf16.msra.mxu0 0
    %476 = vmatprep.subr.bf16.mxu0 0
    %477 = vmatpush1.bf16.msra.mxu0 0
    %478 = vmatprep.subr.bf16.mxu0 0
    %479 = vmatpush1.bf16.msra.mxu0 0
    %480 = vmatprep.subr.bf16.mxu0 0
    %481 = vmatpush1.bf16.msra.mxu0 0
    %482 = vmatprep.subr.bf16.mxu0 0
    %483 = vmatpush1.bf16.msra.mxu0 0
    %484 = vmatprep.subr.bf16.mxu0 0
    %485 = vmatpush1.bf16.msra.mxu0 0
    %486 = vmatprep.subr.bf16.mxu0 0
    %487 = vmatpush1.bf16.msra.mxu0 0
    %488 = vmatprep.subr.bf16.mxu0 0
    %489 = vmatpush1.bf16.msra.mxu0 0
    %490 = vmatprep.subr.bf16.mxu0 0
    %491 = vmatpush1.bf16.msra.mxu0 0
    %492 = vmatprep.mubr.bf16.mxu0 0
    %493 = vmatmul.mubr.bf16.gmra.mrb[0].mxu0 %v458
    %v494 = vpop.f32.mrb[0].mxu0
    %v495 = vadd.f32 0.0, %v494
    %v496 = vpop.f32.mrb[0].mxu0
    %v497 = vadd.f32 0.0, %v496
    %v498 = vpop.f32.mrb[0].mxu0
    %v499 = vpop.f32.mrb[0].mxu0
    %500 = vdwg.mxu0
    %v501 = vadd.f32 %v100, %v495
    %v502 = vadd.f32 %v101, %v497
    %v503 = vxor.u32 %v501, 2147483648
    %v504 = vmul.f32 %v503, 1.442695
    %v505 = vpow.pop %v504
    %v506 = vadd.f32 %v505, 1.0
    %v507 = vrcp.pop %v506
    %v508 = vmul.f32 1.0, %v507
    %v509 = vxor.u32 %v502, 2147483648
    %v510 = vmul.f32 %v509, 1.442695
    %v511 = vpow.pop %v510
    %v512 = vadd.f32 %v511, 1.0
    %v513 = vrcp.pop %v512
    %v514 = vmul.f32 1.0, %v513
    %v515 = vtanh.pop %v502
    %v517 = vrot.slane %v447, 6
    %v519 = vmul.f32 %v508, %v517
    %521 = vrot.lane.b32.xlu0 %v515, 64
    %v522 = vpop.permute.xlu0 %521
    %v524 = vmul.f32 %v508, %v522
    %526 = vrot.lane.b32.xlu0 %v524, 64
    %v527 = vpop.permute.xlu0 %526
    %v529 = vadd.f32 %v519, %v527
    %v530 = vtanh.pop %v529
    %532 = vrot.lane.b32.xlu0 %v530, 64
    %v533 = vpop.permute.xlu0 %532
    %v535 = vmul.f32 %v514, %v533
    %v536 = vpack.c.bf16 %v535, %v535
    %v538 = vsel %vm192, %v536, 0
    %540 = vmatprep.subr.bf16.mxu0 %v177
    %541 = vmatpush1.bf16.msra.mxu0 %v176
    %542 = vmatprep.subr.bf16.mxu0 %v179
    %543 = vmatpush1.bf16.msra.mxu0 %v178
    %544 = vmatprep.subr.bf16.mxu0 %v181
    %545 = vmatpush1.bf16.msra.mxu0 %v180
    %546 = vmatprep.subr.bf16.mxu0 %v183
    %547 = vmatpush1.bf16.msra.mxu0 %v182
    %548 = vmatprep.subr.bf16.mxu0 0
    %549 = vmatpush1.bf16.msra.mxu0 0
    %550 = vmatprep.subr.bf16.mxu0 0
    %551 = vmatpush1.bf16.msra.mxu0 0
    %552 = vmatprep.subr.bf16.mxu0 0
    %553 = vmatpush1.bf16.msra.mxu0 0
    %554 = vmatprep.subr.bf16.mxu0 0
    %555 = vmatpush1.bf16.msra.mxu0 0
    %556 = vmatprep.subr.bf16.mxu0 0
    %557 = vmatpush1.bf16.msra.mxu0 0
    %558 = vmatprep.subr.bf16.mxu0 0
    %559 = vmatpush1.bf16.msra.mxu0 0
    %560 = vmatprep.subr.bf16.mxu0 0
    %561 = vmatpush1.bf16.msra.mxu0 0
    %562 = vmatprep.subr.bf16.mxu0 0
    %563 = vmatpush1.bf16.msra.mxu0 0
    %564 = vmatprep.subr.bf16.mxu0 0
    %565 = vmatpush1.bf16.msra.mxu0 0
    %566 = vmatprep.subr.bf16.mxu0 0
    %567 = vmatpush1.bf16.msra.mxu0 0
    %568 = vmatprep.subr.bf16.mxu0 0
    %569 = vmatpush1.bf16.msra.mxu0 0
    %570 = vmatprep.subr.bf16.mxu0 0
    %571 = vmatpush1.bf16.msra.mxu0 0
    %572 = vmatprep.mubr.bf16.mxu0 0
    %573 = vmatmul.mubr.bf16.gmra.mrb[0].mxu0 %v538
    %v574 = vpop.f32.mrb[0].mxu0
    %v575 = vadd.f32 0.0, %v574
    %v576 = vpop.f32.mrb[0].mxu0
    %v577 = vadd.f32 0.0, %v576
    %v578 = vpop.f32.mrb[0].mxu0
    %v579 = vpop.f32.mrb[0].mxu0
    %580 = vdwg.mxu0
    %v583 = vrot.slane %v575, 6
    %v584 = vrot.slane %v577, 6
    %v587 = vadd.f32 %v100, %v583
    %v588 = vadd.f32 %v101, %v584
    %v589 = vxor.u32 %v587, 2147483648
    %v590 = vmul.f32 %v589, 1.442695
    %v591 = vpow.pop %v590
    %v592 = vadd.f32 %v591, 1.0
    %v593 = vrcp.pop %v592
    %v594 = vmul.f32 1.0, %v593
    %v595 = vxor.u32 %v588, 2147483648
    %v596 = vmul.f32 %v595, 1.442695
    %v597 = vpow.pop %v596
    %v598 = vadd.f32 %v597, 1.0
    %v599 = vrcp.pop %v598
    %v600 = vmul.f32 1.0, %v599
    %v601 = vtanh.pop %v588
    %v603 = vrot.slane %v529, 6
    %v605 = vmul.f32 %v594, %v603
    %607 = vrot.lane.b32.xlu0 %v601, 64
    %v608 = vpop.permute.xlu0 %607
    %v610 = vmul.f32 %v594, %v608
    %612 = vrot.lane.b32.xlu0 %v610, 64
    %v613 = vpop.permute.xlu0 %612
    %v615 = vadd.f32 %v605, %v613
    %v616 = vtanh.pop %v615
    %618 = vrot.lane.b32.xlu0 %v616, 64
    %v619 = vpop.permute.xlu0 %618
    %v621 = vmul.f32 %v600, %v619
    %v622 = vpack.c.bf16 %v621, %v621
    %v624 = vrot.slane %v622, 1
    %v626 = vsel %vm192, %v624, 0
    %628 = vmatprep.subr.bf16.mxu0 %v177
    %629 = vmatpush1.bf16.msra.mxu0 %v176
    %630 = vmatprep.subr.bf16.mxu0 %v179
    %631 = vmatpush1.bf16.msra.mxu0 %v178
    %632 = vmatprep.subr.bf16.mxu0 %v181
    %633 = vmatpush1.bf16.msra.mxu0 %v180
    %634 = vmatprep.subr.bf16.mxu0 %v183
    %635 = vmatpush1.bf16.msra.mxu0 %v182
    %636 = vmatprep.subr.bf16.mxu0 0
    %637 = vmatpush1.bf16.msra.mxu0 0
    %638 = vmatprep.subr.bf16.mxu0 0
    %639 = vmatpush1.bf16.msra.mxu0 0
    %640 = vmatprep.subr.bf16.mxu0 0
    %641 = vmatpush1.bf16.msra.mxu0 0
    %642 = vmatprep.subr.bf16.mxu0 0
    %643 = vmatpush1.bf16.msra.mxu0 0
    %644 = vmatprep.subr.bf16.mxu0 0
    %645 = vmatpush1.bf16.msra.mxu0 0
    %646 = vmatprep.subr.bf16.mxu0 0
    %647 = vmatpush1.bf16.msra.mxu0 0
    %648 = vmatprep.subr.bf16.mxu0 0
    %649 = vmatpush1.bf16.msra.mxu0 0
    %650 = vmatprep.subr.bf16.mxu0 0
    %651 = vmatpush1.bf16.msra.mxu0 0
    %652 = vmatprep.subr.bf16.mxu0 0
    %653 = vmatpush1.bf16.msra.mxu0 0
    %654 = vmatprep.subr.bf16.mxu0 0
    %655 = vmatpush1.bf16.msra.mxu0 0
    %656 = vmatprep.subr.bf16.mxu0 0
    %657 = vmatpush1.bf16.msra.mxu0 0
    %658 = vmatprep.subr.bf16.mxu0 0
    %659 = vmatpush1.bf16.msra.mxu0 0
    %660 = vmatprep.mubr.bf16.mxu0 0
    %661 = vmatmul.mubr.bf16.gmra.mrb[0].mxu0 %v626
    %v662 = vpop.f32.mrb[0].mxu0
    %v663 = vadd.f32 0.0, %v662
    %v664 = vpop.f32.mrb[0].mxu0
    %v665 = vadd.f32 0.0, %v664
    %v666 = vpop.f32.mrb[0].mxu0
    %v667 = vpop.f32.mrb[0].mxu0
    %668 = vdwg.mxu0
    %v671 = vrot.slane %v663, 4
    %v672 = vrot.slane %v665, 4
    %v675 = vadd.f32 %v100, %v671
    %v676 = vadd.f32 %v101, %v672
    %v677 = vxor.u32 %v675, 2147483648
    %v678 = vmul.f32 %v677, 1.442695
    %v679 = vpow.pop %v678
    %v680 = vadd.f32 %v679, 1.0
    %v681 = vrcp.pop %v680
    %v682 = vmul.f32 1.0, %v681
    %v683 = vxor.u32 %v676, 2147483648
    %v684 = vmul.f32 %v683, 1.442695
    %v685 = vpow.pop %v684
    %v686 = vadd.f32 %v685, 1.0
    %v687 = vrcp.pop %v686
    %v688 = vmul.f32 1.0, %v687
    %v689 = vtanh.pop %v676
    %v691 = vrot.slane %v615, 6
    %v693 = vmul.f32 %v682, %v691
    %695 = vrot.lane.b32.xlu0 %v689, 64
    %v696 = vpop.permute.xlu0 %695
    %v698 = vmul.f32 %v682, %v696
    %700 = vrot.lane.b32.xlu0 %v698, 64
    %v701 = vpop.permute.xlu0 %700
    %v703 = vadd.f32 %v693, %v701
    %v704 = vtanh.pop %v703
    %706 = vrot.lane.b32.xlu0 %v704, 64
    %v707 = vpop.permute.xlu0 %706
    %v709 = vmul.f32 %v688, %v707
    %v710 = vpack.c.bf16 %v709, %v709
    %v712 = vrot.slane %v710, 2
    %v714 = vsel %vm192, %v712, 0
    %716 = vmatprep.subr.bf16.mxu0 %v177
    %717 = vmatpush1.bf16.msra.mxu0 %v176
    %718 = vmatprep.subr.bf16.mxu0 %v179
    %719 = vmatpush1.bf16.msra.mxu0 %v178
    %720 = vmatprep.subr.bf16.mxu0 %v181
    %721 = vmatpush1.bf16.msra.mxu0 %v180
    %722 = vmatprep.subr.bf16.mxu0 %v183
    %723 = vmatpush1.bf16.msra.mxu0 %v182
    %724 = vmatprep.subr.bf16.mxu0 0
    %725 = vmatpush1.bf16.msra.mxu0 0
    %726 = vmatprep.subr.bf16.mxu0 0
    %727 = vmatpush1.bf16.msra.mxu0 0
    %728 = vmatprep.subr.bf16.mxu0 0
    %729 = vmatpush1.bf16.msra.mxu0 0
    %730 = vmatprep.subr.bf16.mxu0 0
    %731 = vmatpush1.bf16.msra.mxu0 0
    %732 = vmatprep.subr.bf16.mxu0 0
    %733 = vmatpush1.bf16.msra.mxu0 0
    %734 = vmatprep.subr.bf16.mxu0 0
    %735 = vmatpush1.bf16.msra.mxu0 0
    %736 = vmatprep.subr.bf16.mxu0 0
    %737 = vmatpush1.bf16.msra.mxu0 0
    %738 = vmatprep.subr.bf16.mxu0 0
    %739 = vmatpush1.bf16.msra.mxu0 0
    %740 = vmatprep.subr.bf16.mxu0 0
    %741 = vmatpush1.bf16.msra.mxu0 0
    %742 = vmatprep.subr.bf16.mxu0 0
    %743 = vmatpush1.bf16.msra.mxu0 0
    %744 = vmatprep.subr.bf16.mxu0 0
    %745 = vmatpush1.bf16.msra.mxu0 0
    %746 = vmatprep.subr.bf16.mxu0 0
    %747 = vmatpush1.bf16.msra.mxu0 0
    %748 = vmatprep.mubr.bf16.mxu0 0
    %749 = vmatmul.mubr.bf16.gmra.mrb[0].mxu0 %v714
    %v750 = vpop.f32.mrb[0].mxu0
    %v751 = vadd.f32 0.0, %v750
    %v752 = vpop.f32.mrb[0].mxu0
    %v753 = vadd.f32 0.0, %v752
    %v754 = vpop.f32.mrb[0].mxu0
    %v755 = vpop.f32.mrb[0].mxu0
    %756 = vdwg.mxu0
    %v759 = vrot.slane %v751, 2
    %v760 = vrot.slane %v753, 2
    %v763 = vadd.f32 %v100, %v759
    %v764 = vadd.f32 %v101, %v760
    %v765 = vxor.u32 %v763, 2147483648
    %v766 = vmul.f32 %v765, 1.442695
    %v767 = vpow.pop %v766
    %v768 = vadd.f32 %v767, 1.0
    %v769 = vrcp.pop %v768
    %v770 = vmul.f32 1.0, %v769
    %v771 = vxor.u32 %v764, 2147483648
    %v772 = vmul.f32 %v771, 1.442695
    %v773 = vpow.pop %v772
    %v774 = vadd.f32 %v773, 1.0
    %v775 = vrcp.pop %v774
    %v776 = vmul.f32 1.0, %v775
    %v777 = vtanh.pop %v764
    %v779 = vrot.slane %v703, 6
    %v781 = vmul.f32 %v770, %v779
    %783 = vrot.lane.b32.xlu0 %v777, 64
    %v784 = vpop.permute.xlu0 %783
    %v786 = vmul.f32 %v770, %v784
    %788 = vrot.lane.b32.xlu0 %v786, 64
    %v789 = vpop.permute.xlu0 %788
    %v791 = vadd.f32 %v781, %v789
    %v792 = vtanh.pop %v791
    %794 = vrot.lane.b32.xlu0 %v792, 64
    %v795 = vpop.permute.xlu0 %794
    %v797 = vmul.f32 %v776, %v795
    %v798 = vpack.c.bf16 %v797, %v797
    %v799 = vld [vmem:[%s4] sm:$0xf]
    %v800 = vld [vmem:[%s4 + $0x4] sm:$0xf]
    %v801 = vld [vmem:[%s4 + $0x8] sm:$0xf]
    %v802 = vld [vmem:[%s4 + $0xc] sm:$0xf]
    %v803 = vld [vmem:[%s4 + $0x10] sm:$0xf]
    %v804 = vld [vmem:[%s4 + $0x14] sm:$0xf]
    %v805 = vld [vmem:[%s4 + $0x18] sm:$0xf]
    %v806 = vld [vmem:[%s4 + $0x1c] sm:$0xf]
    %v807 = vld [vmem:[%s5] sm:$0x1]
    %v809 = vlaneseq
    %v810 = vshrl.u32 %v809, 7
    %v811 = vsub.s32 0, %v810
    %v812 = vrot.slane %v807, %v811
    %v815 = vrot.slane %v798, 3
    %v824 = vunpack.c.l.b16 %v799
    %v825 = vunpack.c.l.b16 %v800
    %v826 = vunpack.c.l.b16 %v801
    %v827 = vunpack.c.l.b16 %v802
    %v828 = vunpack.c.l.b16 %v803
    %v829 = vunpack.c.l.b16 %v804
    %v830 = vunpack.c.l.b16 %v805
    %v831 = vunpack.c.l.b16 %v806
    %v832 = vpack.c.b16 %v825, %v824
    %v833 = vpack.c.b16 %v827, %v826
    %v834 = vpack.c.b16 %v829, %v828
    %v835 = vpack.c.b16 %v831, %v830
    %v841 = vsel %vm192, %v815, 0
    %843 = vmatprep.subr.bf16.mxu0 0
    %844 = vmatpush1.bf16.msra.mxu0 %v832
    %845 = vmatprep.subr.bf16.mxu0 0
    %846 = vmatpush1.bf16.msra.mxu0 %v833
    %847 = vmatprep.subr.bf16.mxu0 0
    %848 = vmatpush1.bf16.msra.mxu0 %v834
    %849 = vmatprep.subr.bf16.mxu0 0
    %850 = vmatpush1.bf16.msra.mxu0 %v835
    %851 = vmatprep.subr.bf16.mxu0 0
    %852 = vmatpush1.bf16.msra.mxu0 0
    %853 = vmatprep.subr.bf16.mxu0 0
    %854 = vmatpush1.bf16.msra.mxu0 0
    %855 = vmatprep.subr.bf16.mxu0 0
    %856 = vmatpush1.bf16.msra.mxu0 0
    %857 = vmatprep.subr.bf16.mxu0 0
    %858 = vmatpush1.bf16.msra.mxu0 0
    %859 = vmatprep.subr.bf16.mxu0 0
    %860 = vmatpush1.bf16.msra.mxu0 0
    %861 = vmatprep.subr.bf16.mxu0 0
    %862 = vmatpush1.bf16.msra.mxu0 0
    %863 = vmatprep.subr.bf16.mxu0 0
    %864 = vmatpush1.bf16.msra.mxu0 0
    %865 = vmatprep.subr.bf16.mxu0 0
    %866 = vmatpush1.bf16.msra.mxu0 0
    %867 = vmatprep.subr.bf16.mxu0 0
    %868 = vmatpush1.bf16.msra.mxu0 0
    %869 = vmatprep.subr.bf16.mxu0 0
    %870 = vmatpush1.bf16.msra.mxu0 0
    %871 = vmatprep.subr.bf16.mxu0 0
    %872 = vmatpush1.bf16.msra.mxu0 0
    %873 = vmatprep.subr.bf16.mxu0 0
    %874 = vmatpush1.bf16.msra.mxu0 0
    %875 = vmatprep.mubr.bf16.mxu0 0
    %876 = vmatmul.mubr.bf16.gmra.mrb[0].mxu0 %v841
    %v877 = vpop.f32.mrb[0].mxu0
    %v878 = vadd.f32 %v812, %v877
    %v879 = vpop.f32.mrb[0].mxu0
    %v880 = vpop.f32.mrb[0].mxu0
    %v881 = vpop.f32.mrb[0].mxu0
    %882 = vdwg.mxu0
    %v883 = vxor.u32 %v878, 2147483648
    %v884 = vmul.f32 %v883, 1.442695
    %v885 = vpow.pop %v884
    %v886 = vadd.f32 %v885, 1.0
    %v887 = vrcp.pop %v886
    %v888 = vmul.f32 1.0, %v887
    %v889 = vtanh.pop %v878
    %v891 = vrot.slane %v791, 6
    %892 = vrot.lane.b32.xlu0 %v891, 64
    %v893 = vpop.permute.xlu0 %892
    %v895 = vmul.f32 %v888, %v893
    %897 = vrot.lane.b32.xlu0 %v889, 64
    %v898 = vpop.permute.xlu0 %897
    %v900 = vmul.f32 %v888, %v898
    %902 = vrot.lane.b32.xlu0 %v900, 32
    %v903 = vpop.permute.xlu0 %902
    %v905 = vadd.f32 %v895, %v903
    %v906 = vtanh.pop %v905
    %908 = vrot.lane.b32.xlu0 %v906, 64
    %v909 = vpop.permute.xlu0 %908
    %v911 = vmul.f32 %v888, %v909
    %v912 = vld [vmem:[%s6] sm:$0x1]
    %v914 = vlaneseq
    %v915 = vshrl.u32 %v914, 7
    %v916 = vsub.s32 0, %v915
    %v917 = vrot.slane %v912, %v916
    %918 = vrot.lane.b32.xlu0 %v917, 96
    %v919 = vpop.permute.xlu0 %918
    %v921 = vmul.f32 %v911, %v919
    %923 = vrot.lane.b32.xlu0 %v921, 32
    %v924 = vpop.permute.xlu0 %923
    %vm926 = vcmask 254976
    %v927 = vsel %vm926, %v924, 0.0
    %928 = vadd.xlane.f32.xlu0 %v927
    %v929 = vpop.xlane.xlu0 %928
    %v930 = vld [vmem:[#allocation2] sm:$0x1]
    %v932 = vlaneseq
    %v933 = vshrl.u32 %v932, 7
    %v934 = vsub.s32 0, %v933
    %v935 = vrot.slane %v930, %v934
    %v937 = vadd.f32 %v929, %v935
    %vm938 = vcmask 1024
    %939 = vst.msk [vmem:[%s8] sm:$0x3] %vm938, %v937
    // Predicated region
    $region42: #{tpu_custom_call.1} parent=1 // pred_check
      _
    $region43: #{tpu_custom_call.1} parent=1 // pred_check_branch
      %941 = sbr.rel (0) target = $region45
    $region44: #{tpu_custom_call.1} parent=1 // pred_region
      _
    $region45: #{tpu_custom_call.1} parent=1 // pred_fallthru
      _
    // Predicated region
    $region46: #{tpu_custom_call.1} parent=1 // pred_check
      _
    $region47: #{tpu_custom_call.1} parent=1 // pred_check_branch
      %943 = sbr.rel (0) target = $region49
    $region48: #{tpu_custom_call.1} parent=1 // pred_region
      _
    $region49: #{tpu_custom_call.1} parent=1 // pred_fallthru
      _
    %944 = vsyncpa [#allocation4], 1
    %945 = vsyncpa [#allocation6], 1

</llo_original>
